<compile_context>
chip_gen: v5e
topology: v5e:2x2
jax: 0.10.0
libtpu: 0.0.40
codegen_flags: <defaults>
</compile_context>

<pallas_src>
import functools

import jax
import jax.numpy as jnp
from jax.experimental import pallas as pl
from jax.experimental.pallas import tpu as pltpu

_LANE = 128
_SUBLANE = 8
_PAD_NEG = -1e30  # padded-logit bias fill; exp(pad - max) underflows to exactly 0


def _round_up(x, m):
    return ((x + m - 1) // m) * m


def _make_kernel(c_real, c_pad):
    def kernel(x1_ref, x2_ref, w1_ref, w2_ref, b_ref, o_ref):
        # Two MXU matmuls accumulated in f32 into the same tile, one folded
        # bias add, then a numerically-stable softmax over the lane-dense
        # (padded) class axis.  Padded columns carry a -1e30 bias, so they
        # contribute exactly 0 to the exp-sum; only the real columns are stored.
        z = jnp.dot(x1_ref[...], w1_ref[...], preferred_element_type=jnp.float32)
        z = z + jnp.dot(x2_ref[...], w2_ref[...], preferred_element_type=jnp.float32)
        z = z + b_ref[...]                                   # (1, Cp) broadcast
        z = z - jnp.max(z, axis=-1, keepdims=True)
        e = jnp.exp(z)
        p = e / jnp.sum(e, axis=-1, keepdims=True)           # exact divide (row sums == 1)
        if c_real != c_pad:
            p = p[:, :c_real]                                # store only real class columns
        o_ref[...] = p.astype(o_ref.dtype)
    return kernel


def prepare_classifier_params(w1, b1, w2, b2):
    """One-time parameter prep, hoisted out of the per-call forward path.

    w1, w2: (H, C) (transposed vs torch's (C, H)); b1, b2: (C,) or (1, C).
    Returns (w1p, w2p, b_folded): class axis zero-padded to a multiple of 128,
    folded bias filled with -1e30 in the padded columns."""
    _, C = w1.shape
    Cp = _round_up(C, _LANE)
    b = (jnp.reshape(b1, (1, C)) + jnp.reshape(b2, (1, C))).astype(jnp.float32)
    if Cp != C:
        pad = ((0, 0), (0, Cp - C))
        w1p = jnp.pad(w1, pad)
        w2p = jnp.pad(w2, pad)
        b = jnp.pad(b, pad, constant_values=_PAD_NEG)
    else:
        w1p, w2p = w1, w2
    return w1p, w2p, b


def _vmem_limit_bytes():
    """Generation-aware scoped-VMEM limit: ~half of physical VMEM
    (128 MiB on v5e/v6e -> 64 MiB limit, 64 MiB on v7x -> 32 MiB limit),
    with a conservative v7x-safe fallback if the query is unavailable."""
    cap = None
    try:
        cap = getattr(pltpu.get_tpu_info(), "vmem_capacity_bytes", None)
    except Exception:
        cap = None
    if not cap:
        cap = 64 * 1024 * 1024
    return int(min(cap // 2, 100 * 1024 * 1024))


def _pick_batch_tile(B, H, Cp, working_budget, block_b=None):
    """Largest multiple-of-8 batch tile that (a) keeps the double-buffered working
    set under the budget (lane-padding aware), (b) leaves >=2 grid steps for
    pipelining / v7x dual-TC sharding, (c) stays <= 2048 rows per tile."""
    B8 = _round_up(B, _SUBLANE)
    H_lanes = _round_up(H, _LANE)          # a (TB, H) tile occupies >=128 lanes in VMEM
    # Resident weights + bias (constant index_map); counted double-buffered to be safe.
    fixed = 4 * (2 * 2 * _round_up(H, _SUBLANE) * Cp + 2 * _SUBLANE * Cp)
    # Per batch row: x1 + x2 tiles (2 bufs each) + output tile (2 bufs, Cp lanes in VMEM).
    per_row = 4 * (2 * 2 * H_lanes + 2 * Cp)
    avail = max(working_budget - fixed, per_row * _SUBLANE)
    tb = min(B8, max(_SUBLANE, avail // per_row))
    tb = min(tb, 2048)                     # per-grid-step overhead already well amortized
    if B8 > 2 * _SUBLANE:
        # Guarantee at least two grid steps: keeps DMA/compute overlap alive and
        # lets the "parallel" batch axis be split across v7x's two TensorCores.
        tb = min(tb, _round_up(pl.cdiv(B8, 2), _SUBLANE))
    if block_b is not None:
        tb = min(tb, max(_SUBLANE, _round_up(block_b, _SUBLANE)))
    tb = max(_SUBLANE, (tb // _SUBLANE) * _SUBLANE)
    return B if tb >= B else tb


def custom_classifier_forward(x1, x2, w1p, w2p, b, *, class_num=None, block_b=None):
    """x1, x2: (B, H) f32; (w1p, w2p, b) from prepare_classifier_params().
    Returns (B, class_num) softmax probabilities (f32)."""
    B, H = x1.shape
    Cp = w1p.shape[1]
    C = Cp if class_num is None else class_num

    vmem_limit = _vmem_limit_bytes()
    TB = _pick_batch_tile(B, H, Cp, working_budget=(vmem_limit * 3) // 4, block_b=block_b)
    grid = (pl.cdiv(B, TB),)

    flops = 2 * 2 * B * H * Cp                       # two matmuls, 2 flops / MAC
    bytes_accessed = 4 * (2 * B * H + 2 * H * Cp + Cp + B * C)

    # TODO(synk): secondary opts left out for robustness — single fused (TB,2H)x(2H,Cp)
    # dot (needs lane-axis concat) and pipeline_mode=pl.Buffered(1) on the weight specs.
    return pl.pallas_call(
        _make_kernel(C, Cp),
        out_shape=jax.ShapeDtypeStruct((B, C), jnp.float32),
        grid=grid,
        in_specs=[
            pl.BlockSpec((TB, H), lambda i: (i, 0)),     # x1 tile (double-buffered)
            pl.BlockSpec((TB, H), lambda i: (i, 0)),     # x2 tile (double-buffered)
            pl.BlockSpec((H, Cp), lambda i: (0, 0)),     # w1: VMEM-resident
            pl.BlockSpec((H, Cp), lambda i: (0, 0)),     # w2: VMEM-resident
            pl.BlockSpec((1, Cp), lambda i: (0, 0)),     # folded bias: VMEM-resident
        ],
        out_specs=pl.BlockSpec((TB, C), lambda i: (i, 0)),   # only the real C columns
        compiler_params=pltpu.CompilerParams(
            dimension_semantics=("parallel",),           # megacore / dual-TC sharding
            vmem_limit_bytes=vmem_limit,
        ),
        cost_estimate=pl.CostEstimate(
            flops=flops, transcendentals=B * Cp, bytes_accessed=bytes_accessed),
    )(x1, x2, w1p, w2p, b)


def _reference(x1, x2, w1, b1, w2, b2):
    z = x1 @ w1 + jnp.reshape(b1, (1, -1)) + x2 @ w2 + jnp.reshape(b2, (1, -1))
    return jax.nn.softmax(z, axis=1)


if __name__ == "__main__":
    # Small, deterministic synthetic setup (multiple batch tiles exercise the grid).
    batch = 64
    encoder_hidden_size = 32
    class_num = 16

    key = jax.random.PRNGKey(0)
    kx1, kx2, kw1, kb1, kw2, kb2 = jax.random.split(key, 6)

    x1 = jax.random.normal(kx1, (batch, encoder_hidden_size), dtype=jnp.float32)
    x2 = jax.random.normal(kx2, (batch, encoder_hidden_size), dtype=jnp.float32)

    # nn.Linear(encoder_hidden_size, class_num): weight (C, H), bias (C).
    # Stored transposed (H, C) for the kernel.
    bound = 1.0 / (encoder_hidden_size ** 0.5)
    w1 = jax.random.uniform(kw1, (encoder_hidden_size, class_num),
                            minval=-bound, maxval=bound, dtype=jnp.float32)
    b1 = jax.random.uniform(kb1, (class_num,),
                            minval=-bound, maxval=bound, dtype=jnp.float32)
    w2 = jax.random.uniform(kw2, (encoder_hidden_size, class_num),
                            minval=-bound, maxval=bound, dtype=jnp.float32)
    b2 = jax.random.uniform(kb2, (class_num,),
                            minval=-bound, maxval=bound, dtype=jnp.float32)

    # One-time parameter prep (padding / bias folding hoisted out of the forward path).
    w1p, w2p, bf = prepare_classifier_params(w1, b1, w2, b2)

    fwd = jax.jit(functools.partial(custom_classifier_forward, class_num=class_num))
    out = fwd(x1, x2, w1p, w2p, bf)
    out = jax.block_until_ready(out)

    ref = _reference(x1, x2, w1, b1, w2, b2)
    assert out.shape == (batch, class_num)
    # Kernel vs XLA reference: tolerance covers MXU-precision differences only.
    assert jnp.allclose(out, ref, atol=1e-3, rtol=1e-3)
    # Exact-divide softmax: rows sum to 1 to f32 precision.
    assert jnp.allclose(jnp.sum(out, axis=1), 1.0, atol=1e-5)

    print("KERNEL_OK")
</pallas_src>

<mosaic_0001>
module attributes {stable_mosaic.version = 11 : i64} {
  func.func @kernel(%arg0: i32, %arg1: memref<32x32xf32, #tpu.memory_space<vmem>>, %arg2: memref<32x32xf32, #tpu.memory_space<vmem>>, %arg3: memref<32x128xf32, #tpu.memory_space<vmem>>, %arg4: memref<32x128xf32, #tpu.memory_space<vmem>>, %arg5: memref<1x128xf32, #tpu.memory_space<vmem>>, %arg6: memref<32x16xf32, #tpu.memory_space<vmem>>) attributes {dimension_semantics = [#tpu.dimension_semantics<parallel>], iteration_bounds = array<i64: 2>, scalar_prefetch = 0 : i64, scratch_operands = 0 : i64, tpu.core_type = #tpu.core_type<tc>, window_params = [{transform_indices = @transform_0, window_bounds = array<i64: 32, 32>}, {transform_indices = @transform_1, window_bounds = array<i64: 32, 32>}, {pipeline_mode = #tpu.pipeline_mode<synchronous>, transform_indices = @transform_2, window_bounds = array<i64: 32, 128>}, {pipeline_mode = #tpu.pipeline_mode<synchronous>, transform_indices = @transform_3, window_bounds = array<i64: 32, 128>}, {pipeline_mode = #tpu.pipeline_mode<synchronous>, transform_indices = @transform_4, window_bounds = array<i64: 1, 128>}, {transform_indices = @transform_5, window_bounds = array<i64: 32, 16>}]} {
    %c0 = arith.constant 0 : index
    %c0_0 = arith.constant 0 : index
    %0 = vector.load %arg1[%c0, %c0_0] : memref<32x32xf32, #tpu.memory_space<vmem>>, vector<32x32xf32>
    %c0_1 = arith.constant 0 : index
    %c0_2 = arith.constant 0 : index
    %1 = vector.load %arg3[%c0_1, %c0_2] : memref<32x128xf32, #tpu.memory_space<vmem>>, vector<32x128xf32>
    %cst = arith.constant dense<0.000000e+00> : vector<32x128xf32>
    %2 = tpu.matmul %0, %1, %cst {dimension_numbers = #tpu.dot_dimension_numbers<[1], [0], [0], [1], [0, 0, 1, 1], [], []>} : vector<32x32xf32>, vector<32x128xf32>, vector<32x128xf32> -> vector<32x128xf32>
    %c0_3 = arith.constant 0 : index
    %c0_4 = arith.constant 0 : index
    %3 = vector.load %arg2[%c0_3, %c0_4] : memref<32x32xf32, #tpu.memory_space<vmem>>, vector<32x32xf32>
    %c0_5 = arith.constant 0 : index
    %c0_6 = arith.constant 0 : index
    %4 = vector.load %arg4[%c0_5, %c0_6] : memref<32x128xf32, #tpu.memory_space<vmem>>, vector<32x128xf32>
    %cst_7 = arith.constant dense<0.000000e+00> : vector<32x128xf32>
    %5 = tpu.matmul %3, %4, %cst_7 {dimension_numbers = #tpu.dot_dimension_numbers<[1], [0], [0], [1], [0, 0, 1, 1], [], []>} : vector<32x32xf32>, vector<32x128xf32>, vector<32x128xf32> -> vector<32x128xf32>
    %6 = arith.addf %2, %5 : vector<32x128xf32>
    %c0_8 = arith.constant 0 : index
    %c0_9 = arith.constant 0 : index
    %7 = vector.load %arg5[%c0_8, %c0_9] : memref<1x128xf32, #tpu.memory_space<vmem>>, vector<1x128xf32>
    %8 = vector.broadcast %7 : vector<1x128xf32> to vector<32x128xf32>
    %9 = arith.addf %6, %8 : vector<32x128xf32>
    %cst_10 = arith.constant dense<0xFF800000> : vector<32xf32>
    %10 = vector.multi_reduction <maximumf>, %9, %cst_10 [1] : vector<32x128xf32> to vector<32xf32>
    %11 = vector.shape_cast %10 : vector<32xf32> to vector<32x1xf32>
    %12 = vector.broadcast %11 : vector<32x1xf32> to vector<32x128xf32>
    %13 = arith.subf %9, %12 : vector<32x128xf32>
    %14 = math.exp %13 : vector<32x128xf32>
    %cst_11 = arith.constant dense<0.000000e+00> : vector<32xf32>
    %15 = vector.multi_reduction <add>, %14, %cst_11 [1] : vector<32x128xf32> to vector<32xf32>
    %16 = vector.shape_cast %15 : vector<32xf32> to vector<32x1xf32>
    %17 = vector.broadcast %16 : vector<32x1xf32> to vector<32x128xf32>
    %18 = arith.divf %14, %17 : vector<32x128xf32>
    %19 = vector.extract_strided_slice %18 {offsets = [0, 0], sizes = [32, 16], strides = [1, 1]} : vector<32x128xf32> to vector<32x16xf32>
    %c0_12 = arith.constant 0 : index
    %c0_13 = arith.constant 0 : index
    %20 = vector.load %arg6[%c0_12, %c0_13] : memref<32x16xf32, #tpu.memory_space<vmem>>, vector<32x16xf32>
    tpu.vector_store %arg6[%c0_12, %c0_13], %19 {strides = array<i32>} : memref<32x16xf32, #tpu.memory_space<vmem>>, vector<32x16xf32>,
    return
  }
  func.func @transform_0(%arg0: i32) -> (i32, i32) {
    %c0_i32 = arith.constant 0 : i32
    %c0_i32_0 = arith.constant 0 : i32
    return %arg0, %c0_i32 : i32, i32
  }
  func.func @transform_1(%arg0: i32) -> (i32, i32) {
    %c0_i32 = arith.constant 0 : i32
    %c0_i32_0 = arith.constant 0 : i32
    return %arg0, %c0_i32 : i32, i32
  }
  func.func @transform_2(%arg0: i32) -> (i32, i32) {
    %c0_i32 = arith.constant 0 : i32
    %c0_i32_0 = arith.constant 0 : i32
    %c0_i32_1 = arith.constant 0 : i32
    return %c0_i32, %c0_i32_0 : i32, i32
  }
  func.func @transform_3(%arg0: i32) -> (i32, i32) {
    %c0_i32 = arith.constant 0 : i32
    %c0_i32_0 = arith.constant 0 : i32
    %c0_i32_1 = arith.constant 0 : i32
    return %c0_i32, %c0_i32_0 : i32, i32
  }
  func.func @transform_4(%arg0: i32) -> (i32, i32) {
    %c0_i32 = arith.constant 0 : i32
    %c0_i32_0 = arith.constant 0 : i32
    %c0_i32_1 = arith.constant 0 : i32
    return %c0_i32, %c0_i32_0 : i32, i32
  }
  func.func @transform_5(%arg0: i32) -> (i32, i32) {
    %c0_i32 = arith.constant 0 : i32
    %c0_i32_0 = arith.constant 0 : i32
    return %arg0, %c0_i32 : i32, i32
  }
}

</mosaic_0001>

<llo_original>
// kernel: custom_classifier_forward.1
$region0: #{custom_classifier_forward.1}
  #allocation0 [shape = 'u32[]', space=smem, size = 0x4, offset = 0x4, fixed_abs, tag = 'smem constant byte address 0x4 - core index']
  #allocation1 [shape = 'u32[72,128]{1,0:T(1,128)}', space=vmem, size = 0x9000, scoped, tag = 'internal scratch']
  %s0 = inlined_call_operand.vmem [shape: f32[64,32], index: 0, kind: input, shape index: {}]
  %s1 = inlined_call_operand.vmem [shape: f32[64,32], index: 1, kind: input, shape index: {}]
  %s2 = inlined_call_operand.vmem [shape: f32[32,128], index: 2, kind: input, shape index: {}]
  %s3 = inlined_call_operand.vmem [shape: f32[32,128], index: 3, kind: input, shape index: {}]
  %s4 = inlined_call_operand.vmem [shape: f32[1,128], index: 4, kind: input, shape index: {}]
  %s5 = inlined_call_operand.vmem [shape: f32[64,16], index: 5, kind: output, shape index: {}]
  %s6 = sld [smem:[#allocation0]]
  $region53: #{custom_classifier_forward.1} parent=0
    _
  %s8 = ssub.s32 1, %s6
  %s9 = scalar_select 0, %s8, %s6
  loop: start=0, step=1, limit=4
  $region2: #{custom_classifier_forward.1} parent=0 // loop_pre_header
    _
  $region3: #{custom_classifier_forward.1} parent=0 // loop_header
    %s11 = sphi 0, %s15
    %p12 = scmp.ge.s32.totalorder %s11, 4
    %s21 = sphi 0, %s23
    %s24 = sphi 0, %s21
    %s25 = sphi 0, %s24
    %s41 = sphi 0, %s25
    %s47 = sphi 0, %s49
    %s50 = sphi 0, %s47
    %s51 = sphi 0, %s50
    %s67 = sphi 0, %s51
    %s71 = sphi 0, %s71
    %s73 = sphi 0, %s71
    %s74 = sphi 0, %s73
    %s88 = sphi 0, %s74
    %s92 = sphi 0, %s92
    %s94 = sphi 0, %s92
    %s95 = sphi 0, %s94
    %s109 = sphi 0, %s95
    %s113 = sphi 0, %s113
    %s115 = sphi 0, %s113
    %s116 = sphi 0, %s115
    %s130 = sphi 0, %s116
    %s136 = sphi 0, %s138
    %s139 = sphi 0, %s136
    %s140 = sphi 0, %s139
    %s156 = sphi 0, %s140
  $region4: #{custom_classifier_forward.1} parent=0 // loop_header_branch
    %14 = sbr.rel (%p12) target = $region8
  $region5: #{custom_classifier_forward.1} parent=0 // loop_body
    %s16 = ssub.s32 %s11, 1
    %s17 = ssub.s32 %s11, 2
    %s18 = sadd.s32 %s11, 1
    %s19 = ssub.s32 %s11, %s18
    %p20 = scmp.eq.s32.totalorder %s19, 0
    %s22 = sadd.s32 %s21, 1
    %s23 = scalar_select %p20, %s21, %s22
    %p26 = pneg %p20
    %p27 = scmp.eq.s32.totalorder %s11, 1
    %p28 = por %p26, %p27
    %p29 = scmp.ne.s32.totalorder %s21, %s24
    %p30 = scmp.eq.s32.totalorder %s11, 0
    %p31 = por %p29, %p30
    %p32 = scmp.ne.s32.totalorder %s21, %s24
    %p33 = scmp.eq.s32.totalorder %s16, 1
    %p34 = por %p32, %p33
    %p35 = scmp.ne.s32.totalorder %s24, %s25
    %p36 = scmp.eq.s32.totalorder %s16, 0
    %p37 = por %p35, %p36
    %p38 = scmp.ne.s32.totalorder %s24, %s25
    %p39 = scmp.eq.s32.totalorder %s17, 1
    %p40 = por %p38, %p39
    %p42 = scmp.ne.s32.totalorder %s25, %s41
    %p43 = scmp.eq.s32.totalorder %s17, 0
    %p44 = por %p42, %p43
    %s45 = ssub.s32 %s11, %s18
    %p46 = scmp.eq.s32.totalorder %s45, 0
    %s48 = sadd.s32 %s47, 1
    %s49 = scalar_select %p46, %s47, %s48
    %p52 = pneg %p46
    %p53 = scmp.eq.s32.totalorder %s11, 1
    %p54 = por %p52, %p53
    %p55 = scmp.ne.s32.totalorder %s47, %s50
    %p56 = scmp.eq.s32.totalorder %s11, 0
    %p57 = por %p55, %p56
    %p58 = scmp.ne.s32.totalorder %s47, %s50
    %p59 = scmp.eq.s32.totalorder %s16, 1
    %p60 = por %p58, %p59
    %p61 = scmp.ne.s32.totalorder %s50, %s51
    %p62 = scmp.eq.s32.totalorder %s16, 0
    %p63 = por %p61, %p62
    %p64 = scmp.ne.s32.totalorder %s50, %s51
    %p65 = scmp.eq.s32.totalorder %s17, 1
    %p66 = por %p64, %p65
    %p68 = scmp.ne.s32.totalorder %s51, %s67
    %p69 = scmp.eq.s32.totalorder %s17, 0
    %p70 = por %p68, %p69
    %s72 = sadd.s32 %s71, 1
    %p75 = scmp.eq.s32.totalorder %s11, 1
    %p76 = scmp.ne.s32.totalorder %s71, %s73
    %p77 = scmp.eq.s32.totalorder %s11, 0
    %p78 = por %p76, %p77
    %p79 = scmp.ne.s32.totalorder %s71, %s73
    %p80 = scmp.eq.s32.totalorder %s16, 1
    %p81 = por %p79, %p80
    %p82 = scmp.ne.s32.totalorder %s73, %s74
    %p83 = scmp.eq.s32.totalorder %s16, 0
    %p84 = por %p82, %p83
    %p85 = scmp.ne.s32.totalorder %s73, %s74
    %p86 = scmp.eq.s32.totalorder %s17, 1
    %p87 = por %p85, %p86
    %p89 = scmp.ne.s32.totalorder %s74, %s88
    %p90 = scmp.eq.s32.totalorder %s17, 0
    %p91 = por %p89, %p90
    %s93 = sadd.s32 %s92, 1
    %p96 = scmp.eq.s32.totalorder %s11, 1
    %p97 = scmp.ne.s32.totalorder %s92, %s94
    %p98 = scmp.eq.s32.totalorder %s11, 0
    %p99 = por %p97, %p98
    %p100 = scmp.ne.s32.totalorder %s92, %s94
    %p101 = scmp.eq.s32.totalorder %s16, 1
    %p102 = por %p100, %p101
    %p103 = scmp.ne.s32.totalorder %s94, %s95
    %p104 = scmp.eq.s32.totalorder %s16, 0
    %p105 = por %p103, %p104
    %p106 = scmp.ne.s32.totalorder %s94, %s95
    %p107 = scmp.eq.s32.totalorder %s17, 1
    %p108 = por %p106, %p107
    %p110 = scmp.ne.s32.totalorder %s95, %s109
    %p111 = scmp.eq.s32.totalorder %s17, 0
    %p112 = por %p110, %p111
    %s114 = sadd.s32 %s113, 1
    %p117 = scmp.eq.s32.totalorder %s11, 1
    %p118 = scmp.ne.s32.totalorder %s113, %s115
    %p119 = scmp.eq.s32.totalorder %s11, 0
    %p120 = por %p118, %p119
    %p121 = scmp.ne.s32.totalorder %s113, %s115
    %p122 = scmp.eq.s32.totalorder %s16, 1
    %p123 = por %p121, %p122
    %p124 = scmp.ne.s32.totalorder %s115, %s116
    %p125 = scmp.eq.s32.totalorder %s16, 0
    %p126 = por %p124, %p125
    %p127 = scmp.ne.s32.totalorder %s115, %s116
    %p128 = scmp.eq.s32.totalorder %s17, 1
    %p129 = por %p127, %p128
    %p131 = scmp.ne.s32.totalorder %s116, %s130
    %p132 = scmp.eq.s32.totalorder %s17, 0
    %p133 = por %p131, %p132
    %s134 = ssub.s32 %s11, %s18
    %p135 = scmp.eq.s32.totalorder %s134, 0
    %s137 = sadd.s32 %s136, 1
    %s138 = scalar_select %p135, %s136, %s137
    %p141 = pneg %p135
    %p142 = scmp.eq.s32.totalorder %s11, 1
    %p143 = por %p141, %p142
    %p144 = scmp.ne.s32.totalorder %s136, %s139
    %p145 = scmp.eq.s32.totalorder %s11, 0
    %p146 = por %p144, %p145
    %p147 = scmp.ne.s32.totalorder %s136, %s139
    %p148 = scmp.eq.s32.totalorder %s16, 1
    %p149 = por %p147, %p148
    %p150 = scmp.ne.s32.totalorder %s139, %s140
    %p151 = scmp.eq.s32.totalorder %s16, 0
    %p152 = por %p150, %p151
    %p153 = scmp.ne.s32.totalorder %s139, %s140
    %p154 = scmp.eq.s32.totalorder %s17, 1
    %p155 = por %p153, %p154
    %p157 = scmp.ne.s32.totalorder %s140, %s156
    %p158 = scmp.eq.s32.totalorder %s17, 0
    %p159 = por %p157, %p158
    %p160 = scmp.le.s32.totalorder 1, %s11
    %p161 = scmp.lt.s32.totalorder %s11, 3
    %p162 = pnand %p160, %p161
    %p163 = pneg %p162
    // Predicated region
    $region9: #{custom_classifier_forward.1} parent=5 // pred_check
      _
    $region10: #{custom_classifier_forward.1} parent=5 // pred_check_branch
      %165 = sbr.rel (%p162) target = $region12
    $region11: #{custom_classifier_forward.1} parent=5 // pred_region
      %s166 = ssub.s32 %s11, 1
      // Predicated region
      $region13: #{custom_classifier_forward.1} parent=11 // pred_check
        %p167 = pneg %p84
      $region14: #{custom_classifier_forward.1} parent=11 // pred_check_branch
        %169 = sbr.rel (%p167) target = $region16
      $region15: #{custom_classifier_forward.1} parent=11 // pred_region
        _
      $region16: #{custom_classifier_forward.1} parent=11 // pred_fallthru
        _
      // Predicated region
      $region17: #{custom_classifier_forward.1} parent=11 // pred_check
        %p170 = pneg %p105
      $region18: #{custom_classifier_forward.1} parent=11 // pred_check_branch
        %172 = sbr.rel (%p170) target = $region20
      $region19: #{custom_classifier_forward.1} parent=11 // pred_region
        _
      $region20: #{custom_classifier_forward.1} parent=11 // pred_fallthru
        _
      // Predicated region
      $region21: #{custom_classifier_forward.1} parent=11 // pred_check
        %p173 = pneg %p126
      $region22: #{custom_classifier_forward.1} parent=11 // pred_check_branch
        %175 = sbr.rel (%p173) target = $region24
      $region23: #{custom_classifier_forward.1} parent=11 // pred_region
        _
      $region24: #{custom_classifier_forward.1} parent=11 // pred_fallthru
        _
    $region12: #{custom_classifier_forward.1} parent=5 // pred_fallthru
      _
    %p176 = scmp.lt.s32.totalorder %s11, 2
    // Predicated region
    $region25: #{custom_classifier_forward.1} parent=5 // pred_check
      %p177 = pneg %p176
    $region26: #{custom_classifier_forward.1} parent=5 // pred_check_branch
      %179 = sbr.rel (%p177) target = $region28
    $region27: #{custom_classifier_forward.1} parent=5 // pred_region
      // Predicated region
      $region29: #{custom_classifier_forward.1} parent=27 // pred_check
        %p180 = pneg %p31
      $region30: #{custom_classifier_forward.1} parent=27 // pred_check_branch
        %182 = sbr.rel (%p180) target = $region32
      $region31: #{custom_classifier_forward.1} parent=27 // pred_region
        %s183 = smul.u32 4, %s11
        %p184 = scmp.lt.s32.totalorder %s183, 7
        %s185 = scalar_select %p184, %s183, 7
        %s186 = smul.addr %s185, 8
        %s187 = scalar_lea.vmem %s0, %s186
        %s188 = smul.u32 4, %s11
      $region32: #{custom_classifier_forward.1} parent=27 // pred_fallthru
        _
      // Predicated region
      $region33: #{custom_classifier_forward.1} parent=27 // pred_check
        %p189 = pneg %p57
      $region34: #{custom_classifier_forward.1} parent=27 // pred_check_branch
        %191 = sbr.rel (%p189) target = $region36
      $region35: #{custom_classifier_forward.1} parent=27 // pred_region
        %s192 = smul.u32 4, %s11
        %p193 = scmp.lt.s32.totalorder %s192, 7
        %s194 = scalar_select %p193, %s192, 7
        %s195 = smul.addr %s194, 8
        %s196 = scalar_lea.vmem %s1, %s195
        %s197 = smul.u32 4, %s11
      $region36: #{custom_classifier_forward.1} parent=27 // pred_fallthru
        _
    $region28: #{custom_classifier_forward.1} parent=5 // pred_fallthru
      _
    %p198 = scmp.le.s32.totalorder 1, %s11
    %p199 = scmp.lt.s32.totalorder %s11, 3
    %p200 = pnand %p198, %p199
    %p201 = pneg %p200
    // Predicated region
    $region37: #{custom_classifier_forward.1} parent=5 // pred_check
      _
    $region38: #{custom_classifier_forward.1} parent=5 // pred_check_branch
      %203 = sbr.rel (%p200) target = $region40
    $region39: #{custom_classifier_forward.1} parent=5 // pred_region
      %s204 = ssub.s32 %s11, 1
      %s205 = smul.u32 4, %s16
      %p206 = scmp.lt.s32.totalorder %s205, 7
      %s207 = scalar_select %p206, %s205, 7
      %s208 = smul.addr %s207, 8
      %s209 = scalar_lea.vmem %s0, %s208
      %p210 = pneg %p37
      %p211 = pneg %p34
      %s212 = smul.u32 4, %s16
      %p213 = scmp.lt.s32.totalorder %s212, 7
      %s214 = scalar_select %p213, %s212, 7
      %s215 = smul.addr %s214, 8
      %s216 = scalar_lea.vmem %s1, %s215
      %p217 = pneg %p63
      %p218 = pneg %p60
      %p219 = pneg %p84
      %p220 = pneg %p81
      %p221 = pneg %p105
      %p222 = pneg %p102
      %p223 = pneg %p126
      %p224 = pneg %p123
      %p225 = pneg %p152
      %p226 = pneg %p149
      %s227 = smul.u32 4, %s16
      %p228 = scmp.lt.s32.totalorder %s227, 7
      %s229 = scalar_select %p228, %s227, 7
      %s230 = smul.addr %s229, 8
      %s231 = scalar_lea.vmem %s5, %s230
      %s232 = smul.u32 4, %s16
      %p233 = scmp.lt.s32.totalorder %s232, 7
      %s234 = scalar_select %p233, %s232, 7
      %s235 = smul.addr %s234, 8
      %s236 = scalar_lea.vmem %s0, %s235
      %s237 = smul.u32 4, %s16
      %s238 = smul.u32 4, %s16
      %p239 = scmp.lt.s32.totalorder %s238, 7
      %s240 = scalar_select %p239, %s238, 7
      %s241 = smul.addr %s240, 8
      %s242 = scalar_lea.vmem %s1, %s241
      %s243 = smul.u32 4, %s16
      %s244 = smul.u32 4, %s16
      %p245 = scmp.lt.s32.totalorder %s244, 7
      %s246 = scalar_select %p245, %s244, 7
      %s247 = smul.addr %s246, 8
      %s248 = scalar_lea.vmem %s5, %s247
      %s249 = smul.u32 4, %s16
      %v250 = vld [vmem:[%s236] sm:$0xff]
      %v251 = vld [vmem:[%s236 + $0x8] sm:$0xff]
      %v252 = vld [vmem:[%s236 + $0x10] sm:$0xff]
      %v253 = vld [vmem:[%s236 + $0x18] sm:$0xff]
      %v254 = vld [vmem:[%s2] sm:$0xff]
      %v255 = vld [vmem:[%s2 + $0x8] sm:$0xff]
      %v256 = vld [vmem:[%s2 + $0x10] sm:$0xff]
      %v257 = vld [vmem:[%s2 + $0x18] sm:$0xff]
      %v258 = vld [vmem:[%s242] sm:$0xff]
      %v259 = vld [vmem:[%s242 + $0x8] sm:$0xff]
      %v260 = vld [vmem:[%s242 + $0x10] sm:$0xff]
      %v261 = vld [vmem:[%s242 + $0x18] sm:$0xff]
      %v262 = vld [vmem:[%s3] sm:$0xff]
      %v263 = vld [vmem:[%s3 + $0x8] sm:$0xff]
      %v264 = vld [vmem:[%s3 + $0x10] sm:$0xff]
      %v265 = vld [vmem:[%s3 + $0x18] sm:$0xff]
      %vm266 = vcmask 261120
      %v268 = vsel %vm266, %v258, 0
      %v271 = vsel %vm266, %v259, 0
      %v274 = vsel %vm266, %v260, 0
      %v277 = vsel %vm266, %v261, 0
      %279 = vmatpush.msra.mxu0 0.0
      %280 = vmatpush.msra.mxu0 0.0
      %281 = vmatpush.msra.mxu0 0.0
      %282 = vmatpush.msra.mxu0 0.0
      %283 = vmatpush.msra.mxu0 0.0
      %284 = vmatpush.msra.mxu0 0.0
      %285 = vmatpush.msra.mxu0 0.0
      %286 = vmatpush.msra.mxu0 0.0
      %287 = vmatpush.msra.mxu0 0.0
      %288 = vmatpush.msra.mxu0 0.0
      %289 = vmatpush.msra.mxu0 0.0
      %290 = vmatpush.msra.mxu0 0.0
      %291 = vmatpush.msra.mxu0 %v265
      %292 = vmatpush.msra.mxu0 %v264
      %293 = vmatpush.msra.mxu0 %v263
      %294 = vmatpush.msra.mxu0 %v262
      %295 = vmatmul.f32.gmra.mxu0 %v268
      %v296 = vpop.f32.mrf.mxu0
      %v297 = vadd.f32 0.0, %v296
      %298 = vmatmul.f32.gmra.mxu0 %v271
      %v299 = vpop.f32.mrf.mxu0
      %v300 = vadd.f32 0.0, %v299
      %301 = vmatmul.f32.gmra.mxu0 %v274
      %v302 = vpop.f32.mrf.mxu0
      %v303 = vadd.f32 0.0, %v302
      %304 = vmatmul.f32.gmra.mxu0 %v277
      %v305 = vpop.f32.mrf.mxu0
      %v306 = vadd.f32 0.0, %v305
      %307 = vdwg.mxu0
      %v309 = vsel %vm266, %v250, 0
      %v312 = vsel %vm266, %v251, 0
      %v315 = vsel %vm266, %v252, 0
      %v318 = vsel %vm266, %v253, 0
      %320 = vmatpush.msra.mxu0 0.0
      %321 = vmatpush.msra.mxu0 0.0
      %322 = vmatpush.msra.mxu0 0.0
      %323 = vmatpush.msra.mxu0 0.0
      %324 = vmatpush.msra.mxu0 0.0
      %325 = vmatpush.msra.mxu0 0.0
      %326 = vmatpush.msra.mxu0 0.0
      %327 = vmatpush.msra.mxu0 0.0
      %328 = vmatpush.msra.mxu0 0.0
      %329 = vmatpush.msra.mxu0 0.0
      %330 = vmatpush.msra.mxu0 0.0
      %331 = vmatpush.msra.mxu0 0.0
      %332 = vmatpush.msra.mxu0 %v257
      %333 = vmatpush.msra.mxu0 %v256
      %334 = vmatpush.msra.mxu0 %v255
      %335 = vmatpush.msra.mxu0 %v254
      %336 = vmatmul.f32.gmra.mxu0 %v309
      %v337 = vpop.f32.mrf.mxu0
      %v338 = vadd.f32 %v297, %v337
      %339 = vmatmul.f32.gmra.mxu0 %v312
      %v340 = vpop.f32.mrf.mxu0
      %v341 = vadd.f32 %v300, %v340
      %342 = vmatmul.f32.gmra.mxu0 %v315
      %v343 = vpop.f32.mrf.mxu0
      %v344 = vadd.f32 %v303, %v343
      %345 = vmatmul.f32.gmra.mxu0 %v318
      %v346 = vpop.f32.mrf.mxu0
      %v347 = vadd.f32 %v306, %v346
      %348 = vdwg.mxu0
      %v349 = vld [vmem:[%s4] sm:$0x1]
      %v351 = vperm.slane %v349, 0
      %v353 = vadd.f32 %v338, %v351
      %v354 = vadd.f32 %v341, %v351
      %v355 = vadd.f32 %v344, %v351
      %v356 = vadd.f32 %v347, %v351
      %357 = vmax.xlane.f32.xlu0 %v353
      %v358 = vpop.xlane.xlu0 %357
      %359 = vmax.xlane.f32.xlu0 %v354
      %v360 = vpop.xlane.xlu0 %359
      %361 = vmax.xlane.f32.xlu0 %v355
      %v362 = vpop.xlane.xlu0 %361
      %363 = vmax.xlane.f32.xlu0 %v356
      %v364 = vpop.xlane.xlu0 %363
      %v365 = vsub.f32 %v353, %v358
      %v366 = vsub.f32 %v354, %v360
      %v367 = vsub.f32 %v355, %v362
      %v368 = vsub.f32 %v356, %v364
      %v369 = vmul.f32 %v365, 1.442695
      %v370 = vpow.pop %v369
      %v371 = vmul.f32 %v366, 1.442695
      %v372 = vpow.pop %v371
      %v373 = vmul.f32 %v367, 1.442695
      %v374 = vpow.pop %v373
      %v375 = vmul.f32 %v368, 1.442695
      %v376 = vpow.pop %v375
      %377 = vadd.xlane.f32.xlu0 %v370
      %v378 = vpop.xlane.xlu0 %377
      %379 = vadd.xlane.f32.xlu0 %v372
      %v380 = vpop.xlane.xlu0 %379
      %381 = vadd.xlane.f32.xlu0 %v374
      %v382 = vpop.xlane.xlu0 %381
      %383 = vadd.xlane.f32.xlu0 %v376
      %v384 = vpop.xlane.xlu0 %383
      %v385 = vrcp.pop %v378
      %v386 = vmul.f32 %v378, %v385
      %v387 = vsub.f32 1.0, %v386
      %v388 = vmul.f32 %v385, %v387
      %v389 = vadd.f32 %v385, %v388
      %vm390 = vweird.f32 %v378
      %vm391 = vweird.f32 %v385
      %vm392 = vmor %vm390, %vm391
      %v393 = vsel %vm392, %v385, %v389
      %v394 = vand.u32 2147483647, %v378
      %vm395 = vcmp.eq.f32.partialorder %v394, 8.507059e+37
      %v396 = vand.u32 %v378, 2147483648
      %v397 = vor.u32 1.1754944e-38, %v396
      %v398 = vsel %vm395, %v397, %v393
      %v399 = vmul.f32 %v370, %v398
      %v400 = vrcp.pop %v380
      %v401 = vmul.f32 %v380, %v400
      %v402 = vsub.f32 1.0, %v401
      %v403 = vmul.f32 %v400, %v402
      %v404 = vadd.f32 %v400, %v403
      %vm405 = vweird.f32 %v380
      %vm406 = vweird.f32 %v400
      %vm407 = vmor %vm405, %vm406
      %v408 = vsel %vm407, %v400, %v404
      %v409 = vand.u32 2147483647, %v380
      %vm410 = vcmp.eq.f32.partialorder %v409, 8.507059e+37
      %v411 = vand.u32 %v380, 2147483648
      %v412 = vor.u32 1.1754944e-38, %v411
      %v413 = vsel %vm410, %v412, %v408
      %v414 = vmul.f32 %v372, %v413
      %v415 = vrcp.pop %v382
      %v416 = vmul.f32 %v382, %v415
      %v417 = vsub.f32 1.0, %v416
      %v418 = vmul.f32 %v415, %v417
      %v419 = vadd.f32 %v415, %v418
      %vm420 = vweird.f32 %v382
      %vm421 = vweird.f32 %v415
      %vm422 = vmor %vm420, %vm421
      %v423 = vsel %vm422, %v415, %v419
      %v424 = vand.u32 2147483647, %v382
      %vm425 = vcmp.eq.f32.partialorder %v424, 8.507059e+37
      %v426 = vand.u32 %v382, 2147483648
      %v427 = vor.u32 1.1754944e-38, %v426
      %v428 = vsel %vm425, %v427, %v423
      %v429 = vmul.f32 %v374, %v428
      %v430 = vrcp.pop %v384
      %v431 = vmul.f32 %v384, %v430
      %v432 = vsub.f32 1.0, %v431
      %v433 = vmul.f32 %v430, %v432
      %v434 = vadd.f32 %v430, %v433
      %vm435 = vweird.f32 %v384
      %vm436 = vweird.f32 %v430
      %vm437 = vmor %vm435, %vm436
      %v438 = vsel %vm437, %v430, %v434
      %v439 = vand.u32 2147483647, %v384
      %vm440 = vcmp.eq.f32.partialorder %v439, 8.507059e+37
      %v441 = vand.u32 %v384, 2147483648
      %v442 = vor.u32 1.1754944e-38, %v441
      %v443 = vsel %vm440, %v442, %v438
      %v444 = vmul.f32 %v376, %v443
      %vm445 = vcmask 130048
      %446 = vst.msk [vmem:[%s248] sm:$0xff] %vm445, %v399
      %447 = vst.msk [vmem:[%s248 + $0x8] sm:$0xff] %vm445, %v414
      %448 = vst.msk [vmem:[%s248 + $0x10] sm:$0xff] %vm445, %v429
      %449 = vst.msk [vmem:[%s248 + $0x18] sm:$0xff] %vm445, %v444
      %s450 = smul.u32 4, %s16
      %p451 = scmp.lt.s32.totalorder %s450, 7
      %s452 = scalar_select %p451, %s450, 7
      %s453 = smul.addr %s452, 8
      %s454 = scalar_lea.vmem %s5, %s453
      // Predicated region
      $region41: #{custom_classifier_forward.1} parent=39 // pred_check
        %p455 = pneg %p149
      $region42: #{custom_classifier_forward.1} parent=39 // pred_check_branch
        %457 = sbr.rel (%p455) target = $region44
      $region43: #{custom_classifier_forward.1} parent=39 // pred_region
        %s458 = smul.u32 4, %s16
      $region44: #{custom_classifier_forward.1} parent=39 // pred_fallthru
        _
    $region40: #{custom_classifier_forward.1} parent=5 // pred_fallthru
      _
    %p459 = scmp.le.s32.totalorder 2, %s11
    // Predicated region
    $region45: #{custom_classifier_forward.1} parent=5 // pred_check
      %p460 = pneg %p459
    $region46: #{custom_classifier_forward.1} parent=5 // pred_check_branch
      %462 = sbr.rel (%p460) target = $region48
    $region47: #{custom_classifier_forward.1} parent=5 // pred_region
      %s463 = ssub.s32 %s11, 2
      // Predicated region
      $region49: #{custom_classifier_forward.1} parent=47 // pred_check
        %p464 = pneg %p155
      $region50: #{custom_classifier_forward.1} parent=47 // pred_check_branch
        %466 = sbr.rel (%p464) target = $region52
      $region51: #{custom_classifier_forward.1} parent=47 // pred_region
        %s467 = smul.u32 4, %s17
        %p468 = scmp.lt.s32.totalorder %s467, 7
        %s469 = scalar_select %p468, %s467, 7
        %s470 = smul.addr %s469, 8
        %s471 = scalar_lea.vmem %s5, %s470
      $region52: #{custom_classifier_forward.1} parent=47 // pred_fallthru
        _
    $region48: #{custom_classifier_forward.1} parent=5 // pred_fallthru
      _
  $region6: #{custom_classifier_forward.1} parent=0 // loop_footer
    %s15 = sadd.s32 1, %s11
  $region7: #{custom_classifier_forward.1} parent=0 // loop_footer_branch
    %10 = sbr.rel target = $region3
  $region8: #{custom_classifier_forward.1} parent=0 // loop_exit
    _

</llo_original>
